<compile_context>
chip_gen: v7x
topology: tpu7x:2x2x1
jax: 0.10.0
libtpu: 0.0.40
codegen_flags: <defaults>
</compile_context>

<pallas_src>
import functools

import jax
import jax.numpy as jnp
from jax.experimental import pallas as pl
from jax.experimental.pallas import tpu as pltpu


def _round_up(x, m):
    return (x + m - 1) // m * m


_VMEM_FALLBACK_BYTES = 64 * 1024 * 1024  # conservative (v7x per-TC VMEM)


@functools.lru_cache(maxsize=1)
def _vmem_capacity_bytes():
    try:
        cap = int(pltpu.get_tpu_info().vmem_capacity_bytes)
        if cap < (16 << 20):
            return _VMEM_FALLBACK_BYTES
        return cap
    except Exception:
        return _VMEM_FALLBACK_BYTES


def _gelu(h, approximate):
    if approximate:
        # tanh approximation -> EUP slot, overlaps under the MXU.
        return jax.nn.gelu(h, approximate=True)
    # Exact GELU (nn.GELU default): 0.5 * x * (1 + erf(x / sqrt(2))).
    return 0.5 * h * (1.0 + jax.lax.erf(h * jnp.float32(0.7071067811865476)))


# ---------------------------------------------------------------------------
# Kernels
# ---------------------------------------------------------------------------
def mlp_fused_kernel(x_ref, w1_ref, b1_ref, w2_ref, b2_ref, o_ref, *, approximate_gelu):
    """Weight-resident path: grid=(row_tiles,), full W1/W2 live in VMEM.

    x_ref:  [tm, dim_p]        (compute dtype)
    w1_ref: [dim_p, hidden_p]  (compute dtype)  -- constant block (DMA'd once)
    b1_ref: [1, hidden_p]      (f32)
    w2_ref: [hidden_p, dim_p]  (compute dtype)  -- constant block (DMA'd once)
    b2_ref: [1, dim_p]         (f32)
    o_ref:  [tm, dim_p]
    """
    h = jnp.dot(x_ref[...], w1_ref[...], preferred_element_type=jnp.float32)
    h = h + b1_ref[...]
    h = _gelu(h, approximate_gelu)
    # dropout: identity in eval mode.
    y = jnp.dot(h.astype(w2_ref.dtype), w2_ref[...], preferred_element_type=jnp.float32)
    o_ref[...] = (y + b2_ref[...]).astype(o_ref.dtype)


def mlp_tiled_kernel(x_ref, w1_ref, b1_ref, w2_ref, b2_ref, o_ref, acc_ref, *,
                     approximate_gelu):
    """Tiled path: grid=(row_tiles, hidden_tiles); hidden axis is a reduction.

    acc_ref: [tm, dim_p] f32 VMEM accumulator, persists across the k axis.
    """
    k = pl.program_id(1)

    h = jnp.dot(x_ref[...], w1_ref[...], preferred_element_type=jnp.float32)
    h = h + b1_ref[...]
    h = _gelu(h, approximate_gelu)
    # dropout: identity in eval mode.

    partial = jnp.dot(
        h.astype(w2_ref.dtype), w2_ref[...], preferred_element_type=jnp.float32
    )

    # Fuse zero-init with the first partial product (saves one f32 RMW per row tile).
    @pl.when(k == 0)
    def _():
        acc_ref[...] = partial

    @pl.when(k > 0)
    def _():
        acc_ref[...] += partial

    @pl.when(k == pl.num_programs(1) - 1)
    def _():
        o_ref[...] = (acc_ref[...] + b2_ref[...]).astype(o_ref.dtype)


# ---------------------------------------------------------------------------
# Plan selection (all static, shape-driven)
# ---------------------------------------------------------------------------
def _plan(n8, dim_p, hidden_p, cbytes, obytes):
    cap = _vmem_capacity_bytes()
    vmem_limit = max(32 << 20, min(int(cap * 0.8), 112 << 20))
    budget = vmem_limit - (4 << 20)  # headroom for compiler-internal scratch

    # Row tile: large (arithmetic intensity ~ tm FLOP per weight byte) but keep
    # >=2 row tiles when possible so both v7x TensorCores get work.
    tm = min(512, n8)
    if n8 >= 16 and _round_up(n8, tm) // tm < 2:
        tm = max(8, (n8 // 2) // 8 * 8)
    tm = max(8, tm // 8 * 8)

    # --- Weight-resident fast path -----------------------------------------
    def fits_weight_resident(tm_):
        w = 2 * 2 * dim_p * hidden_p * cbytes        # W1 + W2, double-buffered
        xb = 2 * tm_ * dim_p * cbytes                # x tile, double-buffered
        ob = 2 * tm_ * dim_p * obytes                # out tile, double-buffered
        hb = 2 * tm_ * hidden_p * 4                  # f32 GELU intermediate (est.)
        bias = 2 * (hidden_p + dim_p) * 4
        return w + xb + ob + hb + bias <= budget

    tm_wr = tm
    while tm_wr > 64 and not fits_weight_resident(tm_wr):
        tm_wr = max(64, (tm_wr // 2) // 8 * 8)
    if fits_weight_resident(tm_wr):
        return {"weight_resident": True, "tm": tm_wr, "tk": hidden_p,
                "vmem_limit": vmem_limit}

    # --- Tiled hidden-reduction fallback ------------------------------------
    # tk must divide hidden_p (a multiple of 128) so pre-padded weights are reused.
    tk_candidates = [c for c in (512, 384, 256, 128)
                     if c <= hidden_p and hidden_p % c == 0]
    if not tk_candidates:
        tk_candidates = [128]

    def fits_tiled(tm_, tk_):
        w = 2 * 2 * dim_p * tk_ * cbytes
        xb = 2 * tm_ * dim_p * cbytes
        ob = 2 * tm_ * dim_p * obytes
        hb = 2 * tm_ * tk_ * 4
        acc = tm_ * dim_p * 4
        bias = 2 * (tk_ + dim_p) * 4
        return w + xb + ob + hb + acc + bias <= budget

    tm_t = tm
    chosen_tk = None
    while True:
        for tk_c in tk_candidates:             # shrink tk before tm
            if fits_tiled(tm_t, tk_c):
                chosen_tk = tk_c
                break
        if chosen_tk is not None or tm_t <= 64:
            break
        tm_t = max(64, (tm_t // 2) // 8 * 8)
    if chosen_tk is None:
        chosen_tk = tk_candidates[-1]
    return {"weight_resident": False, "tm": tm_t, "tk": chosen_tk,
            "vmem_limit": vmem_limit}


# ---------------------------------------------------------------------------
# Parameter prep (done ONCE, not per forward call)
# ---------------------------------------------------------------------------
def prepare_mlp_params(w1, b1, w2, b2, compute_dtype=jnp.bfloat16):
    """Pre-cast + pre-pad weights/biases (lane-dense 128 multiples).

    w1: [dim, hidden]  (transpose of nn.Linear fc1.weight)
    w2: [hidden, dim]  (transpose of nn.Linear fc2.weight)
    """
    dim, hidden = w1.shape
    dim_p = _round_up(dim, 128)
    hidden_p = _round_up(hidden, 128)

    def pad2(a, r, c):
        return jnp.pad(a, ((0, r - a.shape[0]), (0, c - a.shape[1])))

    return {
        "w1": pad2(w1.astype(compute_dtype), dim_p, hidden_p),
        "b1": pad2(b1.astype(jnp.float32).reshape(1, hidden), 1, hidden_p),
        "w2": pad2(w2.astype(compute_dtype), hidden_p, dim_p),
        "b2": pad2(b2.astype(jnp.float32).reshape(1, dim), 1, dim_p),
    }


# ---------------------------------------------------------------------------
# Forward
# ---------------------------------------------------------------------------
@functools.partial(jax.jit, static_argnames=("approximate_gelu",))
def mlp_forward(x, params, *, approximate_gelu=False):
    """x: [..., dim]; params from prepare_mlp_params. Returns [..., dim] in x.dtype."""
    w1p, b1p, w2p, b2p = params["w1"], params["b1"], params["w2"], params["b2"]
    dim_p, hidden_p = w1p.shape
    cdtype = w1p.dtype

    orig_shape = x.shape
    dim = orig_shape[-1]
    x2 = x.reshape(-1, dim)
    N = x2.shape[0]
    out_dtype = x.dtype

    cbytes = jnp.dtype(cdtype).itemsize
    obytes = jnp.dtype(out_dtype).itemsize
    n8 = _round_up(N, 8)
    plan = _plan(n8, dim_p, hidden_p, cbytes, obytes)
    tm, tk = plan["tm"], plan["tk"]

    n_p = _round_up(N, tm)
    xp = jnp.pad(x2.astype(cdtype), ((0, n_p - N), (0, dim_p - dim)))

    compiler_params_kwargs = dict(vmem_limit_bytes=plan["vmem_limit"])

    if plan["weight_resident"]:
        grid = (n_p // tm,)
        out = pl.pallas_call(
            functools.partial(mlp_fused_kernel, approximate_gelu=approximate_gelu),
            out_shape=jax.ShapeDtypeStruct((n_p, dim_p), out_dtype),
            grid_spec=pltpu.PrefetchScalarGridSpec(
                num_scalar_prefetch=0,
                grid=grid,
                in_specs=[
                    pl.BlockSpec((tm, dim_p), lambda i: (i, 0)),          # x row tile
                    pl.BlockSpec((dim_p, hidden_p), lambda i: (0, 0)),    # W1 (resident)
                    pl.BlockSpec((1, hidden_p), lambda i: (0, 0)),        # b1
                    pl.BlockSpec((hidden_p, dim_p), lambda i: (0, 0)),    # W2 (resident)
                    pl.BlockSpec((1, dim_p), lambda i: (0, 0)),           # b2
                ],
                out_specs=pl.BlockSpec((tm, dim_p), lambda i: (i, 0)),
            ),
            compiler_params=pltpu.CompilerParams(
                dimension_semantics=("parallel",), **compiler_params_kwargs),
        )(xp, w1p, b1p, w2p, b2p)
    else:
        grid = (n_p // tm, hidden_p // tk)
        out = pl.pallas_call(
            functools.partial(mlp_tiled_kernel, approximate_gelu=approximate_gelu),
            out_shape=jax.ShapeDtypeStruct((n_p, dim_p), out_dtype),
            grid_spec=pltpu.PrefetchScalarGridSpec(
                num_scalar_prefetch=0,
                grid=grid,
                in_specs=[
                    pl.BlockSpec((tm, dim_p), lambda i, k: (i, 0)),       # x row tile
                    pl.BlockSpec((dim_p, tk), lambda i, k: (0, k)),       # W1 hidden slice
                    pl.BlockSpec((1, tk), lambda i, k: (0, k)),           # b1 hidden slice
                    pl.BlockSpec((tk, dim_p), lambda i, k: (k, 0)),       # W2 hidden slice
                    pl.BlockSpec((1, dim_p), lambda i, k: (0, 0)),        # b2
                ],
                out_specs=pl.BlockSpec((tm, dim_p), lambda i, k: (i, 0)),
                scratch_shapes=[pltpu.VMEM((tm, dim_p), jnp.float32)],
            ),
            compiler_params=pltpu.CompilerParams(
                dimension_semantics=("parallel", "arbitrary"), **compiler_params_kwargs),
        )(xp, w1p, b1p, w2p, b2p)

    return out[:N, :dim].reshape(orig_shape)


# ---------------------------------------------------------------------------
# Pure-JAX reference (same bf16-in / f32-accumulate numerics)
# ---------------------------------------------------------------------------
def reference_mlp(x, w1, b1, w2, b2, compute_dtype=jnp.bfloat16):
    xc = x.astype(compute_dtype)
    h = jnp.dot(xc, w1.astype(compute_dtype), preferred_element_type=jnp.float32)
    h = h + b1.astype(jnp.float32)
    h = 0.5 * h * (1.0 + jax.lax.erf(h * jnp.float32(0.7071067811865476)))
    y = jnp.dot(h.astype(compute_dtype), w2.astype(compute_dtype),
                preferred_element_type=jnp.float32)
    return (y + b2.astype(jnp.float32)).astype(x.dtype)


if __name__ == "__main__":
    # Small shapes consistent with the module: batch=2, seq=8, dim=32, hidden=64.
    batch, seq, dim, hidden = 2, 8, 32, 64
    key = jax.random.PRNGKey(0)
    kx, kw1, kb1, kw2, kb2 = jax.random.split(key, 5)

    x = jax.random.normal(kx, (batch, seq, dim), dtype=jnp.float32)

    # Deterministic parameter init mimicking nn.Linear's uniform(-1/sqrt(fan_in), +).
    lim1 = 1.0 / jnp.sqrt(jnp.float32(dim))
    lim2 = 1.0 / jnp.sqrt(jnp.float32(hidden))
    w1 = jax.random.uniform(kw1, (dim, hidden), jnp.float32, -lim1, lim1)
    b1 = jax.random.uniform(kb1, (hidden,), jnp.float32, -lim1, lim1)
    w2 = jax.random.uniform(kw2, (hidden, dim), jnp.float32, -lim2, lim2)
    b2 = jax.random.uniform(kb2, (dim,), jnp.float32, -lim2, lim2)

    # Weight cast/pad hoisted out of the per-call path (done once).
    params = prepare_mlp_params(w1, b1, w2, b2)

    out = mlp_forward(x, params)
    jax.block_until_ready(out)

    # Correctness check against pure-JAX reference (same bf16 matmul precision).
    ref = reference_mlp(x.reshape(batch * seq, dim), w1, b1, w2, b2).reshape(
        batch, seq, dim)
    assert jnp.allclose(out, ref, atol=2e-3, rtol=2e-3), "mismatch vs reference"

    print("KERNEL_OK")
</pallas_src>

<mosaic_0001>
module attributes {stable_mosaic.version = 11 : i64} {
  func.func @mlp_fused_kernel(%arg0: i32, %arg1: memref<8x128xbf16, #tpu.memory_space<vmem>>, %arg2: memref<128x128xbf16, #tpu.memory_space<vmem>>, %arg3: memref<1x128xf32, #tpu.memory_space<vmem>>, %arg4: memref<128x128xbf16, #tpu.memory_space<vmem>>, %arg5: memref<1x128xf32, #tpu.memory_space<vmem>>, %arg6: memref<8x128xf32, #tpu.memory_space<vmem>>) attributes {dimension_semantics = [#tpu.dimension_semantics<parallel>], iteration_bounds = array<i64: 2>, scalar_prefetch = 0 : i64, scratch_operands = 0 : i64, tpu.core_type = #tpu.core_type<tc>, window_params = [{transform_indices = @transform_0, window_bounds = array<i64: 8, 128>}, {pipeline_mode = #tpu.pipeline_mode<synchronous>, transform_indices = @transform_1, window_bounds = array<i64: 128, 128>}, {pipeline_mode = #tpu.pipeline_mode<synchronous>, transform_indices = @transform_2, window_bounds = array<i64: 1, 128>}, {pipeline_mode = #tpu.pipeline_mode<synchronous>, transform_indices = @transform_3, window_bounds = array<i64: 128, 128>}, {pipeline_mode = #tpu.pipeline_mode<synchronous>, transform_indices = @transform_4, window_bounds = array<i64: 1, 128>}, {transform_indices = @transform_5, window_bounds = array<i64: 8, 128>}]} {
    %c0 = arith.constant 0 : index
    %c0_0 = arith.constant 0 : index
    %0 = vector.load %arg1[%c0, %c0_0] : memref<8x128xbf16, #tpu.memory_space<vmem>>, vector<8x128xbf16>
    %c0_1 = arith.constant 0 : index
    %c0_2 = arith.constant 0 : index
    %1 = vector.load %arg2[%c0_1, %c0_2] : memref<128x128xbf16, #tpu.memory_space<vmem>>, vector<128x128xbf16>
    %cst = arith.constant dense<0.000000e+00> : vector<8x128xf32>
    %2 = tpu.matmul %0, %1, %cst {dimension_numbers = #tpu.dot_dimension_numbers<[1], [0], [0], [1], [0, 0, 1, 1], [], []>} : vector<8x128xbf16>, vector<128x128xbf16>, vector<8x128xf32> -> vector<8x128xf32>
    %c0_3 = arith.constant 0 : index
    %c0_4 = arith.constant 0 : index
    %3 = vector.load %arg3[%c0_3, %c0_4] : memref<1x128xf32, #tpu.memory_space<vmem>>, vector<1x128xf32>
    %4 = vector.broadcast %3 : vector<1x128xf32> to vector<8x128xf32>
    %5 = arith.addf %2, %4 : vector<8x128xf32>
    %cst_5 = arith.constant 5.000000e-01 : f32
    %6 = vector.broadcast %cst_5 : f32 to vector<8x128xf32>
    %7 = arith.mulf %6, %5 : vector<8x128xf32>
    %cst_6 = arith.constant 0.707106769 : f32
    %8 = vector.broadcast %cst_6 : f32 to vector<8x128xf32>
    %9 = arith.mulf %5, %8 : vector<8x128xf32>
    %10 = math.erf %9 : vector<8x128xf32>
    %cst_7 = arith.constant 1.000000e+00 : f32
    %11 = vector.broadcast %cst_7 : f32 to vector<8x128xf32>
    %12 = arith.addf %11, %10 : vector<8x128xf32>
    %13 = arith.mulf %7, %12 : vector<8x128xf32>
    %14 = arith.truncf %13 : vector<8x128xf32> to vector<8x128xbf16>
    %c0_8 = arith.constant 0 : index
    %c0_9 = arith.constant 0 : index
    %15 = vector.load %arg4[%c0_8, %c0_9] : memref<128x128xbf16, #tpu.memory_space<vmem>>, vector<128x128xbf16>
    %cst_10 = arith.constant dense<0.000000e+00> : vector<8x128xf32>
    %16 = tpu.matmul %14, %15, %cst_10 {dimension_numbers = #tpu.dot_dimension_numbers<[1], [0], [0], [1], [0, 0, 1, 1], [], []>} : vector<8x128xbf16>, vector<128x128xbf16>, vector<8x128xf32> -> vector<8x128xf32>
    %c0_11 = arith.constant 0 : index
    %c0_12 = arith.constant 0 : index
    %17 = vector.load %arg5[%c0_11, %c0_12] : memref<1x128xf32, #tpu.memory_space<vmem>>, vector<1x128xf32>
    %18 = vector.broadcast %17 : vector<1x128xf32> to vector<8x128xf32>
    %19 = arith.addf %16, %18 : vector<8x128xf32>
    %c0_13 = arith.constant 0 : index
    %c0_14 = arith.constant 0 : index
    %20 = vector.load %arg6[%c0_13, %c0_14] : memref<8x128xf32, #tpu.memory_space<vmem>>, vector<8x128xf32>
    tpu.vector_store %arg6[%c0_13, %c0_14], %19 {strides = array<i32>} : memref<8x128xf32, #tpu.memory_space<vmem>>, vector<8x128xf32>,
    return
  }
  func.func @transform_0(%arg0: i32) -> (i32, i32) {
    %c0_i32 = arith.constant 0 : i32
    %c0_i32_0 = arith.constant 0 : i32
    return %arg0, %c0_i32 : i32, i32
  }
  func.func @transform_1(%arg0: i32) -> (i32, i32) {
    %c0_i32 = arith.constant 0 : i32
    %c0_i32_0 = arith.constant 0 : i32
    %c0_i32_1 = arith.constant 0 : i32
    return %c0_i32, %c0_i32_0 : i32, i32
  }
  func.func @transform_2(%arg0: i32) -> (i32, i32) {
    %c0_i32 = arith.constant 0 : i32
    %c0_i32_0 = arith.constant 0 : i32
    %c0_i32_1 = arith.constant 0 : i32
    return %c0_i32, %c0_i32_0 : i32, i32
  }
  func.func @transform_3(%arg0: i32) -> (i32, i32) {
    %c0_i32 = arith.constant 0 : i32
    %c0_i32_0 = arith.constant 0 : i32
    %c0_i32_1 = arith.constant 0 : i32
    return %c0_i32, %c0_i32_0 : i32, i32
  }
  func.func @transform_4(%arg0: i32) -> (i32, i32) {
    %c0_i32 = arith.constant 0 : i32
    %c0_i32_0 = arith.constant 0 : i32
    %c0_i32_1 = arith.constant 0 : i32
    return %c0_i32, %c0_i32_0 : i32, i32
  }
  func.func @transform_5(%arg0: i32) -> (i32, i32) {
    %c0_i32 = arith.constant 0 : i32
    %c0_i32_0 = arith.constant 0 : i32
    return %arg0, %c0_i32 : i32, i32
  }
}

</mosaic_0001>

<llo_original>
// kernel: mlp_forward.1
$region0: #{mlp_forward.1}
  #allocation0 [shape = 'u32[]', space=smem, size = 0x4, offset = 0x4, fixed_abs, tag = 'smem constant byte address 0x4 - core index']
  #allocation1 [shape = 'u32[144,128]{1,0:T(1,128)}', space=vmem, size = 0x12000, scoped, tag = 'internal scratch']
  %s0 = inlined_call_operand.vmem [shape: bf16[16,128], index: 0, kind: input, shape index: {}]
  %s1 = inlined_call_operand.hbm [shape: bf16[128,128], index: 1, kind: input, shape index: {}]
  %s2 = inlined_call_operand.vmem [shape: f32[1,128], index: 2, kind: input, shape index: {}]
  %s3 = inlined_call_operand.hbm [shape: bf16[128,128], index: 3, kind: input, shape index: {}]
  %s4 = inlined_call_operand.vmem [shape: f32[1,128], index: 4, kind: input, shape index: {}]
  %s5 = inlined_call_operand.vmem [shape: f32[16,128], index: 5, kind: output, shape index: {}]
  %s6 = sld [smem:[#allocation0]]
  $region61: #{mlp_forward.1} parent=0
    _
  %s8 = ssub.s32 1, %s6
  %s9 = scalar_select 0, %s8, %s6
  $region1: #{mlp_forward.1} parent=0
    #allocation2 [shape = 'u8[32768]{0}', space=vmem, size = 0x8000, scoped, tag = 'input window, operand 1, single buffered']
    #allocation3 [shape = 's32[2]{0}', space=sflag, size = 0x8, scoped, tag = 'scoped memory for mlp_forward.1']
    #allocation4 [shape = 'u8[32768]{0}', space=vmem, size = 0x8000, scoped, tag = 'input window, operand 3, single buffered']
    #allocation5 [shape = 's32[1]{0}', space=sflag, size = 0x4, scoped, tag = 'scoped memory for mlp_forward.1']
    %10 = vsyncpa [#allocation3], 0
    %11 = vsyncpa [#allocation5], 0
    loop: start=0, step=1, limit=4
    $region2: #{mlp_forward.1} parent=1 // loop_pre_header
      _
    $region3: #{mlp_forward.1} parent=1 // loop_header
      %s13 = sphi 0, %s17
      %p14 = scmp.ge.s32.totalorder %s13, 4
      %s23 = sphi 0, %s25
      %s26 = sphi 0, %s23
      %s27 = sphi 0, %s26
      %s43 = sphi 0, %s27
      %s47 = sphi 0, %s47
      %s49 = sphi 0, %s47
      %s50 = sphi 0, %s49
      %s64 = sphi 0, %s50
      %s68 = sphi 0, %s68
      %s70 = sphi 0, %s68
      %s71 = sphi 0, %s70
      %s85 = sphi 0, %s71
      %s89 = sphi 0, %s89
      %s91 = sphi 0, %s89
      %s92 = sphi 0, %s91
      %s106 = sphi 0, %s92
      %s110 = sphi 0, %s110
      %s112 = sphi 0, %s110
      %s113 = sphi 0, %s112
      %s127 = sphi 0, %s113
      %s133 = sphi 0, %s135
      %s136 = sphi 0, %s133
      %s137 = sphi 0, %s136
      %s153 = sphi 0, %s137
    $region4: #{mlp_forward.1} parent=1 // loop_header_branch
      %16 = sbr.rel (%p14) target = $region8
    $region5: #{mlp_forward.1} parent=1 // loop_body
      %s18 = ssub.s32 %s13, 1
      %s19 = ssub.s32 %s13, 2
      %s20 = sadd.s32 %s13, 1
      %s21 = ssub.s32 %s13, %s20
      %p22 = scmp.eq.s32.totalorder %s21, 0
      %s24 = sadd.s32 %s23, 1
      %s25 = scalar_select %p22, %s23, %s24
      %p28 = pneg %p22
      %p29 = scmp.eq.s32.totalorder %s13, 1
      %p30 = por %p28, %p29
      %p31 = scmp.ne.s32.totalorder %s23, %s26
      %p32 = scmp.eq.s32.totalorder %s13, 0
      %p33 = por %p31, %p32
      %p34 = scmp.ne.s32.totalorder %s23, %s26
      %p35 = scmp.eq.s32.totalorder %s18, 1
      %p36 = por %p34, %p35
      %p37 = scmp.ne.s32.totalorder %s26, %s27
      %p38 = scmp.eq.s32.totalorder %s18, 0
      %p39 = por %p37, %p38
      %p40 = scmp.ne.s32.totalorder %s26, %s27
      %p41 = scmp.eq.s32.totalorder %s19, 1
      %p42 = por %p40, %p41
      %p44 = scmp.ne.s32.totalorder %s27, %s43
      %p45 = scmp.eq.s32.totalorder %s19, 0
      %p46 = por %p44, %p45
      %s48 = sadd.s32 %s47, 1
      %p51 = scmp.eq.s32.totalorder %s13, 1
      %p52 = scmp.ne.s32.totalorder %s47, %s49
      %p53 = scmp.eq.s32.totalorder %s13, 0
      %p54 = por %p52, %p53
      %p55 = scmp.ne.s32.totalorder %s47, %s49
      %p56 = scmp.eq.s32.totalorder %s18, 1
      %p57 = por %p55, %p56
      %p58 = scmp.ne.s32.totalorder %s49, %s50
      %p59 = scmp.eq.s32.totalorder %s18, 0
      %p60 = por %p58, %p59
      %p61 = scmp.ne.s32.totalorder %s49, %s50
      %p62 = scmp.eq.s32.totalorder %s19, 1
      %p63 = por %p61, %p62
      %p65 = scmp.ne.s32.totalorder %s50, %s64
      %p66 = scmp.eq.s32.totalorder %s19, 0
      %p67 = por %p65, %p66
      %s69 = sadd.s32 %s68, 1
      %p72 = scmp.eq.s32.totalorder %s13, 1
      %p73 = scmp.ne.s32.totalorder %s68, %s70
      %p74 = scmp.eq.s32.totalorder %s13, 0
      %p75 = por %p73, %p74
      %p76 = scmp.ne.s32.totalorder %s68, %s70
      %p77 = scmp.eq.s32.totalorder %s18, 1
      %p78 = por %p76, %p77
      %p79 = scmp.ne.s32.totalorder %s70, %s71
      %p80 = scmp.eq.s32.totalorder %s18, 0
      %p81 = por %p79, %p80
      %p82 = scmp.ne.s32.totalorder %s70, %s71
      %p83 = scmp.eq.s32.totalorder %s19, 1
      %p84 = por %p82, %p83
      %p86 = scmp.ne.s32.totalorder %s71, %s85
      %p87 = scmp.eq.s32.totalorder %s19, 0
      %p88 = por %p86, %p87
      %s90 = sadd.s32 %s89, 1
      %p93 = scmp.eq.s32.totalorder %s13, 1
      %p94 = scmp.ne.s32.totalorder %s89, %s91
      %p95 = scmp.eq.s32.totalorder %s13, 0
      %p96 = por %p94, %p95
      %p97 = scmp.ne.s32.totalorder %s89, %s91
      %p98 = scmp.eq.s32.totalorder %s18, 1
      %p99 = por %p97, %p98
      %p100 = scmp.ne.s32.totalorder %s91, %s92
      %p101 = scmp.eq.s32.totalorder %s18, 0
      %p102 = por %p100, %p101
      %p103 = scmp.ne.s32.totalorder %s91, %s92
      %p104 = scmp.eq.s32.totalorder %s19, 1
      %p105 = por %p103, %p104
      %p107 = scmp.ne.s32.totalorder %s92, %s106
      %p108 = scmp.eq.s32.totalorder %s19, 0
      %p109 = por %p107, %p108
      %s111 = sadd.s32 %s110, 1
      %p114 = scmp.eq.s32.totalorder %s13, 1
      %p115 = scmp.ne.s32.totalorder %s110, %s112
      %p116 = scmp.eq.s32.totalorder %s13, 0
      %p117 = por %p115, %p116
      %p118 = scmp.ne.s32.totalorder %s110, %s112
      %p119 = scmp.eq.s32.totalorder %s18, 1
      %p120 = por %p118, %p119
      %p121 = scmp.ne.s32.totalorder %s112, %s113
      %p122 = scmp.eq.s32.totalorder %s18, 0
      %p123 = por %p121, %p122
      %p124 = scmp.ne.s32.totalorder %s112, %s113
      %p125 = scmp.eq.s32.totalorder %s19, 1
      %p126 = por %p124, %p125
      %p128 = scmp.ne.s32.totalorder %s113, %s127
      %p129 = scmp.eq.s32.totalorder %s19, 0
      %p130 = por %p128, %p129
      %s131 = ssub.s32 %s13, %s20
      %p132 = scmp.eq.s32.totalorder %s131, 0
      %s134 = sadd.s32 %s133, 1
      %s135 = scalar_select %p132, %s133, %s134
      %p138 = pneg %p132
      %p139 = scmp.eq.s32.totalorder %s13, 1
      %p140 = por %p138, %p139
      %p141 = scmp.ne.s32.totalorder %s133, %s136
      %p142 = scmp.eq.s32.totalorder %s13, 0
      %p143 = por %p141, %p142
      %p144 = scmp.ne.s32.totalorder %s133, %s136
      %p145 = scmp.eq.s32.totalorder %s18, 1
      %p146 = por %p144, %p145
      %p147 = scmp.ne.s32.totalorder %s136, %s137
      %p148 = scmp.eq.s32.totalorder %s18, 0
      %p149 = por %p147, %p148
      %p150 = scmp.ne.s32.totalorder %s136, %s137
      %p151 = scmp.eq.s32.totalorder %s19, 1
      %p152 = por %p150, %p151
      %p154 = scmp.ne.s32.totalorder %s137, %s153
      %p155 = scmp.eq.s32.totalorder %s19, 0
      %p156 = por %p154, %p155
      %p157 = scmp.le.s32.totalorder 1, %s13
      %p158 = scmp.lt.s32.totalorder %s13, 3
      %p159 = pnand %p157, %p158
      %p160 = pneg %p159
      // Predicated region
      $region9: #{mlp_forward.1} parent=5 // pred_check
        _
      $region10: #{mlp_forward.1} parent=5 // pred_check_branch
        %162 = sbr.rel (%p159) target = $region12
      $region11: #{mlp_forward.1} parent=5 // pred_region
        %s163 = ssub.s32 %s13, 1
        // Predicated region
        $region13: #{mlp_forward.1} parent=11 // pred_check
          %p164 = pneg %p60
        $region14: #{mlp_forward.1} parent=11 // pred_check_branch
          %166 = sbr.rel (%p164) target = $region16
        $region15: #{mlp_forward.1} parent=11 // pred_region
          %s168 = ssub.s32 1024, 1024
          %169 = vsyncadd [#allocation3], %s168
          %s170 = sshll.u32 [#allocation2], 4
          %s171 = int_to_ptr.vmem [resolvable:$true] %s170
          %176 = dma.hbm_to_vmem [thread:$0]  %s1, 1024, %s171, [#allocation3], 64, 64, 4
        $region16: #{mlp_forward.1} parent=11 // pred_fallthru
          _
        // Predicated region
        $region17: #{mlp_forward.1} parent=11 // pred_check
          %p177 = pneg %p81
        $region18: #{mlp_forward.1} parent=11 // pred_check_branch
          %179 = sbr.rel (%p177) target = $region20
        $region19: #{mlp_forward.1} parent=11 // pred_region
          _
        $region20: #{mlp_forward.1} parent=11 // pred_fallthru
          _
        // Predicated region
        $region21: #{mlp_forward.1} parent=11 // pred_check
          %p180 = pneg %p102
        $region22: #{mlp_forward.1} parent=11 // pred_check_branch
          %182 = sbr.rel (%p180) target = $region24
        $region23: #{mlp_forward.1} parent=11 // pred_region
          %s184 = ssub.s32 1024, 1024
          %185 = vsyncadd [#allocation5], %s184
          %s186 = sshll.u32 [#allocation4], 4
          %s187 = int_to_ptr.vmem [resolvable:$true] %s186
          %192 = dma.hbm_to_vmem [thread:$0]  %s3, 1024, %s187, [#allocation5], 64, 64, 4
        $region24: #{mlp_forward.1} parent=11 // pred_fallthru
          _
        // Predicated region
        $region25: #{mlp_forward.1} parent=11 // pred_check
          %p193 = pneg %p123
        $region26: #{mlp_forward.1} parent=11 // pred_check_branch
          %195 = sbr.rel (%p193) target = $region28
        $region27: #{mlp_forward.1} parent=11 // pred_region
          _
        $region28: #{mlp_forward.1} parent=11 // pred_fallthru
          _
      $region12: #{mlp_forward.1} parent=5 // pred_fallthru
        _
      %p196 = scmp.lt.s32.totalorder %s13, 2
      // Predicated region
      $region29: #{mlp_forward.1} parent=5 // pred_check
        %p197 = pneg %p196
      $region30: #{mlp_forward.1} parent=5 // pred_check_branch
        %199 = sbr.rel (%p197) target = $region32
      $region31: #{mlp_forward.1} parent=5 // pred_region
        // Predicated region
        $region33: #{mlp_forward.1} parent=31 // pred_check
          %p200 = pneg %p33
        $region34: #{mlp_forward.1} parent=31 // pred_check_branch
          %202 = sbr.rel (%p200) target = $region36
        $region35: #{mlp_forward.1} parent=31 // pred_region
          %p203 = scmp.lt.s32.totalorder %s13, 1
          %s204 = scalar_select %p203, %s13, 1
          %s205 = smul.addr %s204, 4
          %s206 = scalar_lea.vmem %s0, %s205
        $region36: #{mlp_forward.1} parent=31 // pred_fallthru
          _
      $region32: #{mlp_forward.1} parent=5 // pred_fallthru
        _
      %p207 = scmp.le.s32.totalorder 1, %s13
      %p208 = scmp.lt.s32.totalorder %s13, 3
      %p209 = pnand %p207, %p208
      %p210 = pneg %p209
      // Predicated region
      $region37: #{mlp_forward.1} parent=5 // pred_check
        _
      $region38: #{mlp_forward.1} parent=5 // pred_check_branch
        %212 = sbr.rel (%p209) target = $region40
      $region39: #{mlp_forward.1} parent=5 // pred_region
        %s213 = ssub.s32 %s13, 1
        // Predicated region
        $region41: #{mlp_forward.1} parent=39 // pred_check
          %p214 = pneg %p60
        $region42: #{mlp_forward.1} parent=39 // pred_check_branch
          %216 = sbr.rel (%p214) target = $region44
        $region43: #{mlp_forward.1} parent=39 // pred_region
          %217 = dma.done [#allocation3], 1024
        $region44: #{mlp_forward.1} parent=39 // pred_fallthru
          _
        // Predicated region
        $region45: #{mlp_forward.1} parent=39 // pred_check
          %p218 = pneg %p102
        $region46: #{mlp_forward.1} parent=39 // pred_check_branch
          %220 = sbr.rel (%p218) target = $region48
        $region47: #{mlp_forward.1} parent=39 // pred_region
          %221 = dma.done [#allocation5], 1024
        $region48: #{mlp_forward.1} parent=39 // pred_fallthru
          _
        %p222 = scmp.lt.s32.totalorder %s18, 1
        %s223 = scalar_select %p222, %s18, 1
        %s224 = smul.addr %s223, 4
        %s225 = scalar_lea.vmem %s0, %s224
        %p226 = pneg %p39
        %p227 = pneg %p36
        %p228 = pneg %p60
        %p229 = pneg %p57
        %p230 = pneg %p81
        %p231 = pneg %p78
        %p232 = pneg %p102
        %p233 = pneg %p99
        %p234 = pneg %p123
        %p235 = pneg %p120
        %p236 = pneg %p149
        %p237 = pneg %p146
        %p238 = scmp.lt.s32.totalorder %s18, 1
        %s239 = scalar_select %p238, %s18, 1
        %s240 = smul.addr %s239, 8
        %s241 = scalar_lea.vmem %s5, %s240
        %p242 = scmp.lt.s32.totalorder %s18, 1
        %s243 = scalar_select %p242, %s18, 1
        %s244 = smul.addr %s243, 4
        %s245 = scalar_lea.vmem %s0, %s244
        %p246 = scmp.lt.s32.totalorder %s18, 1
        %s247 = scalar_select %p246, %s18, 1
        %s248 = smul.addr %s247, 8
        %s249 = scalar_lea.vmem %s5, %s248
        %v251 = vld [vmem:[%s245] sm:$0xf]
        %v252 = vld [vmem:[#allocation2] sm:$0xf]
        %v253 = vld [vmem:[#allocation2 + $0x4] sm:$0xf]
        %v254 = vld [vmem:[#allocation2 + $0x8] sm:$0xf]
        %v255 = vld [vmem:[#allocation2 + $0xc] sm:$0xf]
        %v256 = vld [vmem:[#allocation2 + $0x10] sm:$0xf]
        %v257 = vld [vmem:[#allocation2 + $0x14] sm:$0xf]
        %v258 = vld [vmem:[#allocation2 + $0x18] sm:$0xf]
        %v259 = vld [vmem:[#allocation2 + $0x1c] sm:$0xf]
        %v260 = vld [vmem:[#allocation2 + $0x20] sm:$0xf]
        %v261 = vld [vmem:[#allocation2 + $0x24] sm:$0xf]
        %v262 = vld [vmem:[#allocation2 + $0x28] sm:$0xf]
        %v263 = vld [vmem:[#allocation2 + $0x2c] sm:$0xf]
        %v264 = vld [vmem:[#allocation2 + $0x30] sm:$0xf]
        %v265 = vld [vmem:[#allocation2 + $0x34] sm:$0xf]
        %v266 = vld [vmem:[#allocation2 + $0x38] sm:$0xf]
        %v267 = vld [vmem:[#allocation2 + $0x3c] sm:$0xf]
        %v268 = vld [vmem:[%s2] sm:$0x1]
        %v270 = vlaneseq
        %v271 = vshrl.u32 %v270, 7
        %v272 = vsub.s32 0, %v271
        %v273 = vrot.slane %v268, %v272
        %v291 = vunpack.c.l.b16 %v252
        %v292 = vunpack.c.l.b16 %v253
        %v293 = vunpack.c.l.b16 %v254
        %v294 = vunpack.c.l.b16 %v255
        %v295 = vunpack.c.l.b16 %v256
        %v296 = vunpack.c.l.b16 %v257
        %v297 = vunpack.c.l.b16 %v258
        %v298 = vunpack.c.l.b16 %v259
        %v299 = vunpack.c.l.b16 %v260
        %v300 = vunpack.c.l.b16 %v261
        %v301 = vunpack.c.l.b16 %v262
        %v302 = vunpack.c.l.b16 %v263
        %v303 = vunpack.c.l.b16 %v264
        %v304 = vunpack.c.l.b16 %v265
        %v305 = vunpack.c.l.b16 %v266
        %v306 = vunpack.c.l.b16 %v267
        %v307 = vpack.c.b16 %v292, %v291
        %v308 = vpack.c.b16 %v294, %v293
        %v309 = vpack.c.b16 %v296, %v295
        %v310 = vpack.c.b16 %v298, %v297
        %v311 = vpack.c.b16 %v300, %v299
        %v312 = vpack.c.b16 %v302, %v301
        %v313 = vpack.c.b16 %v304, %v303
        %v314 = vpack.c.b16 %v306, %v305
        %323 = vmatprep.subr.bf16.mxu0 0
        %324 = vmatpush1.bf16.msra.mxu0 %v307
        %325 = vmatprep.subr.bf16.mxu0 0
        %326 = vmatpush1.bf16.msra.mxu0 %v308
        %327 = vmatprep.subr.bf16.mxu0 0
        %328 = vmatpush1.bf16.msra.mxu0 %v309
        %329 = vmatprep.subr.bf16.mxu0 0
        %330 = vmatpush1.bf16.msra.mxu0 %v310
        %331 = vmatprep.subr.bf16.mxu0 0
        %332 = vmatpush1.bf16.msra.mxu0 %v311
        %333 = vmatprep.subr.bf16.mxu0 0
        %334 = vmatpush1.bf16.msra.mxu0 %v312
        %335 = vmatprep.subr.bf16.mxu0 0
        %336 = vmatpush1.bf16.msra.mxu0 %v313
        %337 = vmatprep.subr.bf16.mxu0 0
        %338 = vmatpush1.bf16.msra.mxu0 %v314
        %339 = vmatprep.subr.bf16.mxu0 0
        %340 = vmatpush1.bf16.msra.mxu0 0
        %341 = vmatprep.subr.bf16.mxu0 0
        %342 = vmatpush1.bf16.msra.mxu0 0
        %343 = vmatprep.subr.bf16.mxu0 0
        %344 = vmatpush1.bf16.msra.mxu0 0
        %345 = vmatprep.subr.bf16.mxu0 0
        %346 = vmatpush1.bf16.msra.mxu0 0
        %347 = vmatprep.subr.bf16.mxu0 0
        %348 = vmatpush1.bf16.msra.mxu0 0
        %349 = vmatprep.subr.bf16.mxu0 0
        %350 = vmatpush1.bf16.msra.mxu0 0
        %351 = vmatprep.subr.bf16.mxu0 0
        %352 = vmatpush1.bf16.msra.mxu0 0
        %353 = vmatprep.subr.bf16.mxu0 0
        %354 = vmatpush1.bf16.msra.mxu0 0
        %355 = vmatprep.mubr.bf16.mxu0 0
        %356 = vmatmul.mubr.bf16.gmra.mrb[0].mxu0 %v251
        %v357 = vpop.f32.mrb[0].mxu0
        %v358 = vadd.f32 %v273, %v357
        %v359 = vpop.f32.mrb[0].mxu0
        %v360 = vpop.f32.mrb[0].mxu0
        %v361 = vpop.f32.mrb[0].mxu0
        %362 = vdwg.mxu0
        %v363 = vmul.f32 %v358, 0.5
        %v364 = vmul.f32 %v358, 0.70710677
        %v365 = verf.f32.pop %v364
        %v366 = vadd.f32 %v365, 1.0
        %v367 = vmul.f32 %v363, %v366
        %v368 = vpack.c.bf16 %v367, %v367
        %v369 = vld [vmem:[#allocation4] sm:$0xf]
        %v370 = vld [vmem:[#allocation4 + $0x4] sm:$0xf]
        %v371 = vld [vmem:[#allocation4 + $0x8] sm:$0xf]
        %v372 = vld [vmem:[#allocation4 + $0xc] sm:$0xf]
        %v373 = vld [vmem:[#allocation4 + $0x10] sm:$0xf]
        %v374 = vld [vmem:[#allocation4 + $0x14] sm:$0xf]
        %v375 = vld [vmem:[#allocation4 + $0x18] sm:$0xf]
        %v376 = vld [vmem:[#allocation4 + $0x1c] sm:$0xf]
        %v377 = vld [vmem:[#allocation4 + $0x20] sm:$0xf]
        %v378 = vld [vmem:[#allocation4 + $0x24] sm:$0xf]
        %v379 = vld [vmem:[#allocation4 + $0x28] sm:$0xf]
        %v380 = vld [vmem:[#allocation4 + $0x2c] sm:$0xf]
        %v381 = vld [vmem:[#allocation4 + $0x30] sm:$0xf]
        %v382 = vld [vmem:[#allocation4 + $0x34] sm:$0xf]
        %v383 = vld [vmem:[#allocation4 + $0x38] sm:$0xf]
        %v384 = vld [vmem:[#allocation4 + $0x3c] sm:$0xf]
        %v385 = vld [vmem:[%s4] sm:$0x1]
        %v387 = vlaneseq
        %v388 = vshrl.u32 %v387, 7
        %v389 = vsub.s32 0, %v388
        %v390 = vrot.slane %v385, %v389
        %v408 = vunpack.c.l.b16 %v369
        %v409 = vunpack.c.l.b16 %v370
        %v410 = vunpack.c.l.b16 %v371
        %v411 = vunpack.c.l.b16 %v372
        %v412 = vunpack.c.l.b16 %v373
        %v413 = vunpack.c.l.b16 %v374
        %v414 = vunpack.c.l.b16 %v375
        %v415 = vunpack.c.l.b16 %v376
        %v416 = vunpack.c.l.b16 %v377
        %v417 = vunpack.c.l.b16 %v378
        %v418 = vunpack.c.l.b16 %v379
        %v419 = vunpack.c.l.b16 %v380
        %v420 = vunpack.c.l.b16 %v381
        %v421 = vunpack.c.l.b16 %v382
        %v422 = vunpack.c.l.b16 %v383
        %v423 = vunpack.c.l.b16 %v384
        %v424 = vpack.c.b16 %v409, %v408
        %v425 = vpack.c.b16 %v411, %v410
        %v426 = vpack.c.b16 %v413, %v412
        %v427 = vpack.c.b16 %v415, %v414
        %v428 = vpack.c.b16 %v417, %v416
        %v429 = vpack.c.b16 %v419, %v418
        %v430 = vpack.c.b16 %v421, %v420
        %v431 = vpack.c.b16 %v423, %v422
        %440 = vmatprep.subr.bf16.mxu0 0
        %441 = vmatpush1.bf16.msra.mxu0 %v424
        %442 = vmatprep.subr.bf16.mxu0 0
        %443 = vmatpush1.bf16.msra.mxu0 %v425
        %444 = vmatprep.subr.bf16.mxu0 0
        %445 = vmatpush1.bf16.msra.mxu0 %v426
        %446 = vmatprep.subr.bf16.mxu0 0
        %447 = vmatpush1.bf16.msra.mxu0 %v427
        %448 = vmatprep.subr.bf16.mxu0 0
        %449 = vmatpush1.bf16.msra.mxu0 %v428
        %450 = vmatprep.subr.bf16.mxu0 0
        %451 = vmatpush1.bf16.msra.mxu0 %v429
        %452 = vmatprep.subr.bf16.mxu0 0
        %453 = vmatpush1.bf16.msra.mxu0 %v430
        %454 = vmatprep.subr.bf16.mxu0 0
        %455 = vmatpush1.bf16.msra.mxu0 %v431
        %456 = vmatprep.subr.bf16.mxu0 0
        %457 = vmatpush1.bf16.msra.mxu0 0
        %458 = vmatprep.subr.bf16.mxu0 0
        %459 = vmatpush1.bf16.msra.mxu0 0
        %460 = vmatprep.subr.bf16.mxu0 0
        %461 = vmatpush1.bf16.msra.mxu0 0
        %462 = vmatprep.subr.bf16.mxu0 0
        %463 = vmatpush1.bf16.msra.mxu0 0
        %464 = vmatprep.subr.bf16.mxu0 0
        %465 = vmatpush1.bf16.msra.mxu0 0
        %466 = vmatprep.subr.bf16.mxu0 0
        %467 = vmatpush1.bf16.msra.mxu0 0
        %468 = vmatprep.subr.bf16.mxu0 0
        %469 = vmatpush1.bf16.msra.mxu0 0
        %470 = vmatprep.subr.bf16.mxu0 0
        %471 = vmatpush1.bf16.msra.mxu0 0
        %472 = vmatprep.mubr.bf16.mxu0 0
        %473 = vmatmul.mubr.bf16.gmra.mrb[0].mxu0 %v368
        %v474 = vpop.f32.mrb[0].mxu0
        %v475 = vadd.f32 %v390, %v474
        %v476 = vpop.f32.mrb[0].mxu0
        %v477 = vpop.f32.mrb[0].mxu0
        %v478 = vpop.f32.mrb[0].mxu0
        %479 = vdwg.mxu0
        %480 = vst [vmem:[%s249] sm:$0xff] %v475
        %p481 = scmp.lt.s32.totalorder %s18, 1
        %s482 = scalar_select %p481, %s18, 1
        %s483 = smul.addr %s482, 8
        %s484 = scalar_lea.vmem %s5, %s483
        // Predicated region
        $region49: #{mlp_forward.1} parent=39 // pred_check
          %p485 = pneg %p146
        $region50: #{mlp_forward.1} parent=39 // pred_check_branch
          %487 = sbr.rel (%p485) target = $region52
        $region51: #{mlp_forward.1} parent=39 // pred_region
          _
        $region52: #{mlp_forward.1} parent=39 // pred_fallthru
          _
      $region40: #{mlp_forward.1} parent=5 // pred_fallthru
        _
      %p488 = scmp.le.s32.totalorder 2, %s13
      // Predicated region
      $region53: #{mlp_forward.1} parent=5 // pred_check
        %p489 = pneg %p488
      $region54: #{mlp_forward.1} parent=5 // pred_check_branch
        %491 = sbr.rel (%p489) target = $region56
      $region55: #{mlp_forward.1} parent=5 // pred_region
        %s492 = ssub.s32 %s13, 2
        // Predicated region
        $region57: #{mlp_forward.1} parent=55 // pred_check
          %p493 = pneg %p152
        $region58: #{mlp_forward.1} parent=55 // pred_check_branch
          %495 = sbr.rel (%p493) target = $region60
        $region59: #{mlp_forward.1} parent=55 // pred_region
          %p496 = scmp.lt.s32.totalorder %s19, 1
          %s497 = scalar_select %p496, %s19, 1
          %s498 = smul.addr %s497, 8
          %s499 = scalar_lea.vmem %s5, %s498
        $region60: #{mlp_forward.1} parent=55 // pred_fallthru
          _
      $region56: #{mlp_forward.1} parent=5 // pred_fallthru
        _
    $region6: #{mlp_forward.1} parent=1 // loop_footer
      %s17 = sadd.s32 1, %s13
    $region7: #{mlp_forward.1} parent=1 // loop_footer_branch
      %12 = sbr.rel target = $region3
    $region8: #{mlp_forward.1} parent=1 // loop_exit
      _
    %500 = vsyncpa [#allocation3], 1
    %s501 = scalar_lea.sflag [#allocation3], 1
    %502 = vsyncpa %s501, 1
    %503 = vsyncpa [#allocation5], 1

</llo_original>
